<compile_context>
chip_gen: v5e
topology: v5e:2x2
jax: 0.10.0
libtpu: 0.0.40
codegen_flags: <defaults>
</compile_context>

<pallas_src>
import jax
import jax.numpy as jnp
from jax.experimental import pallas as pl
from jax.experimental.pallas import tpu as pltpu

_LANE = 128
_MAX_TM = 512            # largest batch tile (review: sweep 512–1024)


def _round_up(x, m):
    return (x + m - 1) // m * m


def _cdiv(a, b):
    return -(-a // b)


def _sublane_multiple(dtype):
    return {4: 8, 2: 16, 1: 32}[jnp.dtype(dtype).itemsize]


def _choose_tm(m, mult):
    """Pick (padded batch, batch tile) with bounded padding waste."""
    mpad = _round_up(m, mult)
    if mpad <= _MAX_TM:
        return mpad, mpad                 # single grid step for small batches
    n_steps = _cdiv(mpad, _MAX_TM)
    tm = _round_up(_cdiv(mpad, n_steps), mult)   # waste < mult rows per step
    return tm * n_steps, tm


def _pad2(a, rows, cols):
    return jnp.pad(a, ((0, rows - a.shape[0]), (0, cols - a.shape[1])))


def _bn_affine(gamma, beta, mean, var, eps=1e-5):
    scale = gamma / jnp.sqrt(var + eps)
    shift = beta - mean * scale
    return scale, shift


def _default_core_parallel():
    """Engage per-TensorCore grid sharding only on multi-core chips (v7x)."""
    try:
        kind = jax.devices()[0].device_kind.lower()
    except Exception:
        return False
    return "v7" in kind


# ---------------------------------------------------------------------------
# Fused whole-network kernel.  The static `plan` describes the layer sequence;
# parameter refs are consumed positionally.  Per-layer vector table rows:
#   linear_relu_bn : 0=bias, 1=bn_scale, 2=bn_shift
#   residual_block : 0=bias1, 1=bias2 (BN pre-folded into w2/b2)
#   linear_relu    : 0=bias
# All matmuls hit the MXU with f32 accumulation; the elementwise epilogue
# stays in f32 (v5e has no bf16 VPU/EUP).
# ---------------------------------------------------------------------------
def _make_fused_kernel(plan, compute_dtype):
    def kernel(*refs):
        x_ref, o_ref, prm = refs[0], refs[-1], refs[1:-1]
        h = x_ref[...]                               # already compute_dtype
        idx = 0
        for op in plan:
            if op == "linear_relu_bn":
                w, vec = prm[idx], prm[idx + 1]
                idx += 2
                z = jnp.dot(h.astype(compute_dtype), w[...],
                            preferred_element_type=jnp.float32)
                z = jnp.maximum(z + vec[0:1, :], 0.0)
                h = z * vec[1:2, :] + vec[2:3, :]
                # Dropout(0.5): identity in eval mode.
            elif op == "residual_block":
                # h + BN(Linear(ReLU(Linear(h))));  BN folded into w2/b2.
                w1, w2, vec = prm[idx], prm[idx + 1], prm[idx + 2]
                idx += 3
                a = jnp.dot(h.astype(compute_dtype), w1[...],
                            preferred_element_type=jnp.float32)
                a = jnp.maximum(a + vec[0:1, :], 0.0)
                h = h + jnp.dot(a.astype(compute_dtype), w2[...],
                                preferred_element_type=jnp.float32) + vec[1:2, :]
            elif op == "linear_relu":
                w, vec = prm[idx], prm[idx + 1]
                idx += 2
                z = jnp.dot(h.astype(compute_dtype), w[...],
                            preferred_element_type=jnp.float32)
                h = jnp.maximum(z + vec[0:1, :], 0.0)
            else:
                raise ValueError(op)
        o_ref[...] = h.astype(o_ref.dtype)
    return kernel


# ---------------------------------------------------------------------------
# One-time host-side parameter preparation (do once, reuse across calls).
# ---------------------------------------------------------------------------
def prepare_auto_decoder_params(params, *, compute_dtype=jnp.bfloat16):
    plan, arrays, matmul_dims = [], [], []
    in_dim = params[0]["w"].shape[0]
    in_f = in_dim
    for p in params:
        K, N = p["w"].shape
        Kp, Np = _round_up(K, _LANE), _round_up(N, _LANE)
        if p["kind"] == "final":                        # Linear -> ReLU
            vec = jnp.zeros((8, Np), jnp.float32).at[0, :N].set(p["b"])
            arrays += [_pad2(p["w"], Kp, Np).astype(compute_dtype), vec]
            plan.append("linear_relu")
            matmul_dims.append((K, N))
        else:                                           # Linear->ReLU->BN->Drop
            s, t = _bn_affine(*p["bn"])
            vec = (jnp.zeros((8, Np), jnp.float32)
                   .at[0, :N].set(p["b"]).at[1, :N].set(s).at[2, :N].set(t))
            arrays += [_pad2(p["w"], Kp, Np).astype(compute_dtype), vec]
            plan.append("linear_relu_bn")
            matmul_dims.append((K, N))
            if "res" in p:                              # + ResidualBlock(N)
                r = p["res"]
                rs, rt = _bn_affine(*r["bn"])
                # BN follows the 2nd Linear with no ReLU between -> fold it.
                w2f = r["w2"] * rs[None, :]
                b2f = r["b2"] * rs + rt
                vec_r = (jnp.zeros((8, Np), jnp.float32)
                         .at[0, :N].set(r["b1"]).at[1, :N].set(b2f))
                arrays += [_pad2(r["w1"], Np, Np).astype(compute_dtype),
                           _pad2(w2f, Np, Np).astype(compute_dtype), vec_r]
                plan.append("residual_block")
                matmul_dims += [(N, N), (N, N)]
        in_f = N
    return dict(
        plan=tuple(plan),
        arrays=tuple(arrays),
        in_dim=int(in_dim),
        out_dim=int(in_f),
        compute_dtype=compute_dtype,
        flops_per_row=2 * sum(k * n for k, n in matmul_dims),
        param_bytes=int(sum(a.size * a.dtype.itemsize for a in arrays)),
    )


# ---------------------------------------------------------------------------
# Forward pass: one pallas_call for the whole decoder, weights VMEM-resident.
# ---------------------------------------------------------------------------
def auto_decoder_forward(x, prepared, *, core_parallel=None):
    plan, arrays = prepared["plan"], prepared["arrays"]
    cdt = prepared["compute_dtype"]
    M, K0 = x.shape
    if K0 != prepared["in_dim"]:
        raise ValueError(f"expected {prepared['in_dim']} features, got {K0}")

    mult = _sublane_multiple(cdt)
    Mpad, tm = _choose_tm(M, mult)
    n_steps = Mpad // tm
    Kpad0 = _round_up(K0, _LANE)
    Npad_out = _round_up(prepared["out_dim"], _LANE)

    if core_parallel is None:
        core_parallel = _default_core_parallel()
    if n_steps > 1:
        sem = pltpu.CORE_PARALLEL if core_parallel else "parallel"
    else:
        sem = "arbitrary"

    # The only per-call host work: pad + cast the activation.
    x_p = jnp.pad(x, ((0, Mpad - M), (0, Kpad0 - K0))).astype(cdt)

    # Resident parameters: constant index_map, single buffer (no pipelining).
    param_specs = [
        pl.BlockSpec(a.shape, lambda i: (0, 0), pipeline_mode=pl.Buffered(1))
        for a in arrays
    ]

    cost = pl.CostEstimate(
        flops=prepared["flops_per_row"] * M,
        transcendentals=0,
        bytes_accessed=int(x.size * x.dtype.itemsize
                           + M * prepared["out_dim"] * 4
                           + prepared["param_bytes"]),
    )

    out_p = pl.pallas_call(
        _make_fused_kernel(plan, cdt),
        out_shape=jax.ShapeDtypeStruct((Mpad, Npad_out), jnp.float32),
        grid_spec=pltpu.PrefetchScalarGridSpec(
            num_scalar_prefetch=0,
            grid=(n_steps,),                               # tile batch only
            in_specs=[pl.BlockSpec((tm, Kpad0), lambda i: (i, 0))] + param_specs,
            out_specs=pl.BlockSpec((tm, Npad_out), lambda i: (i, 0)),
        ),
        compiler_params=pltpu.CompilerParams(dimension_semantics=(sem,)),
        cost_estimate=cost,
    )(x_p, *arrays)
    return out_p[:M, :prepared["out_dim"]]


def make_auto_decoder_fn(prepared, *, core_parallel=None):
    """jit-compiled forward that reuses the prepared (padded/folded) params."""
    return jax.jit(
        lambda x: auto_decoder_forward(x, prepared, core_parallel=core_parallel))


# ---------------------------------------------------------------------------
# Deterministic synthetic parameter init (mirrors the module's __init__ shapes)
# ---------------------------------------------------------------------------
def _init_linear(key, fan_in, fan_out):
    k1, k2 = jax.random.split(key)
    lim = 1.0 / jnp.sqrt(jnp.float32(fan_in))
    w = jax.random.uniform(k1, (fan_in, fan_out), jnp.float32, -lim, lim)
    b = jax.random.uniform(k2, (fan_out,), jnp.float32, -lim, lim)
    return w, b


def _init_bn(key, n):
    k1, k2, k3, k4 = jax.random.split(key, 4)
    gamma = 1.0 + 0.1 * jax.random.normal(k1, (n,), jnp.float32)
    beta = 0.1 * jax.random.normal(k2, (n,), jnp.float32)
    mean = 0.1 * jax.random.normal(k3, (n,), jnp.float32)
    var = jax.random.uniform(k4, (n,), jnp.float32, 0.5, 1.5)
    return gamma, beta, mean, var


def make_auto_decoder_params(key, input_dim, feature_dim, dims):
    rdims = list(reversed(dims))
    params = []
    in_f = feature_dim
    for i in range(len(rdims) + 1):
        key, k1, k2 = jax.random.split(key, 3)
        if i == len(rdims):                               # final: Linear->ReLU
            w, b = _init_linear(k1, in_f, input_dim)
            params.append(dict(kind="final", w=w, b=b))
        else:                                             # Linear->ReLU->BN->Drop
            out_f = rdims[i]
            w, b = _init_linear(k1, in_f, out_f)
            entry = dict(kind="main", w=w, b=b, bn=_init_bn(k2, out_f))
            if i != 0:                                    # + ResidualBlock(out_f)
                key, k3, k4, k5 = jax.random.split(key, 4)
                w1, b1 = _init_linear(k3, out_f, out_f)
                w2, b2 = _init_linear(k4, out_f, out_f)
                entry["res"] = dict(w1=w1, b1=b1, w2=w2, b2=b2,
                                    bn=_init_bn(k5, out_f))
            params.append(entry)
            in_f = out_f
    return params


# ---------------------------------------------------------------------------
# Pure-JAX reference (eval-mode PyTorch semantics)
# ---------------------------------------------------------------------------
def auto_decoder_reference(x, params):
    h = x
    for p in params:
        if p["kind"] == "final":
            h = jnp.maximum(h @ p["w"] + p["b"], 0.0)
        else:
            scale, shift = _bn_affine(*p["bn"])
            h = jnp.maximum(h @ p["w"] + p["b"], 0.0) * scale + shift
            if "res" in p:
                r = p["res"]
                a = jnp.maximum(h @ r["w1"] + r["b1"], 0.0)
                rs, rt = _bn_affine(*r["bn"])
                h = h + ((a @ r["w2"] + r["b2"]) * rs + rt)
    return h


if __name__ == "__main__":
    # AutoDecoder(input_dim=40, feature_dim=32, dims=[64, 96]), batch=16
    input_dim, feature_dim, dims, batch = 40, 32, [64, 96], 16

    key = jax.random.PRNGKey(0)
    kx, kp, kx2 = jax.random.split(key, 3)
    x = jax.random.normal(kx, (batch, feature_dim), jnp.float32)
    params = make_auto_decoder_params(kp, input_dim, feature_dim, dims)
    ref = auto_decoder_reference(x, params)

    # f32 MXU path: tight-tolerance correctness anchor for the fused kernel.
    prep_f32 = prepare_auto_decoder_params(params, compute_dtype=jnp.float32)
    fwd_f32 = make_auto_decoder_fn(prep_f32)
    out = jax.block_until_ready(fwd_f32(x))
    assert out.shape == (batch, input_dim), out.shape
    assert jnp.allclose(out, ref, rtol=1e-4, atol=1e-4), \
        float(jnp.max(jnp.abs(out - ref)))

    # Default bf16 MXU path (f32 accumulation + f32 epilogue) — v5e/v6e/v7x
    # MXUs all run bf16 natively; params prepared once, reused across calls.
    prep_bf16 = prepare_auto_decoder_params(params)       # bf16 default
    fwd_bf16 = make_auto_decoder_fn(prep_bf16)
    out_bf16 = jax.block_until_ready(fwd_bf16(x))
    out_bf16 = jax.block_until_ready(fwd_bf16(x))         # reused: no re-prep
    assert jnp.allclose(out_bf16, ref, rtol=1e-1, atol=1e-1), \
        float(jnp.max(jnp.abs(out_bf16 - ref)))

    # Larger batch: exercises the multi-tile grid (tm<=512, bounded padding)
    # and, on v7x, CORE_PARALLEL sharding across the two TensorCores.
    big = 1030
    xb = jax.random.normal(kx2, (big, feature_dim), jnp.float32)
    refb = auto_decoder_reference(xb, params)
    outb = jax.block_until_ready(fwd_f32(xb))
    assert outb.shape == (big, input_dim), outb.shape
    assert jnp.allclose(outb, refb, rtol=1e-3, atol=1e-3), \
        float(jnp.max(jnp.abs(outb - refb)))
    outb16 = jax.block_until_ready(fwd_bf16(xb))
    assert jnp.allclose(outb16, refb, rtol=1e-1, atol=1e-1), \
        float(jnp.max(jnp.abs(outb16 - refb)))

    print("KERNEL_OK")
</pallas_src>

<mosaic_0001>
module attributes {stable_mosaic.version = 11 : i64} {
  func.func @kernel(%arg0: i32, %arg1: memref<16x128xf32, #tpu.memory_space<vmem>>, %arg2: memref<128x128xf32, #tpu.memory_space<vmem>>, %arg3: memref<8x128xf32, #tpu.memory_space<vmem>>, %arg4: memref<128x128xf32, #tpu.memory_space<vmem>>, %arg5: memref<8x128xf32, #tpu.memory_space<vmem>>, %arg6: memref<128x128xf32, #tpu.memory_space<vmem>>, %arg7: memref<128x128xf32, #tpu.memory_space<vmem>>, %arg8: memref<8x128xf32, #tpu.memory_space<vmem>>, %arg9: memref<128x128xf32, #tpu.memory_space<vmem>>, %arg10: memref<8x128xf32, #tpu.memory_space<vmem>>, %arg11: memref<16x128xf32, #tpu.memory_space<vmem>>) attributes {dimension_semantics = [#tpu.dimension_semantics<arbitrary>], iteration_bounds = array<i64: 1>, scalar_prefetch = 0 : i64, scratch_operands = 0 : i64, tpu.core_type = #tpu.core_type<tc>, window_params = [{transform_indices = @transform_0, window_bounds = array<i64: 16, 128>}, {pipeline_mode = #tpu.pipeline_mode<synchronous>, transform_indices = @transform_1, window_bounds = array<i64: 128, 128>}, {pipeline_mode = #tpu.pipeline_mode<synchronous>, transform_indices = @transform_2, window_bounds = array<i64: 8, 128>}, {pipeline_mode = #tpu.pipeline_mode<synchronous>, transform_indices = @transform_3, window_bounds = array<i64: 128, 128>}, {pipeline_mode = #tpu.pipeline_mode<synchronous>, transform_indices = @transform_4, window_bounds = array<i64: 8, 128>}, {pipeline_mode = #tpu.pipeline_mode<synchronous>, transform_indices = @transform_5, window_bounds = array<i64: 128, 128>}, {pipeline_mode = #tpu.pipeline_mode<synchronous>, transform_indices = @transform_6, window_bounds = array<i64: 128, 128>}, {pipeline_mode = #tpu.pipeline_mode<synchronous>, transform_indices = @transform_7, window_bounds = array<i64: 8, 128>}, {pipeline_mode = #tpu.pipeline_mode<synchronous>, transform_indices = @transform_8, window_bounds = array<i64: 128, 128>}, {pipeline_mode = #tpu.pipeline_mode<synchronous>, transform_indices = @transform_9, window_bounds = array<i64: 8, 128>}, {transform_indices = @transform_10, window_bounds = array<i64: 16, 128>}]} {
    %c0 = arith.constant 0 : index
    %c0_0 = arith.constant 0 : index
    %0 = vector.load %arg1[%c0, %c0_0] : memref<16x128xf32, #tpu.memory_space<vmem>>, vector<16x128xf32>
    %c0_1 = arith.constant 0 : index
    %c0_2 = arith.constant 0 : index
    %1 = vector.load %arg2[%c0_1, %c0_2] : memref<128x128xf32, #tpu.memory_space<vmem>>, vector<128x128xf32>
    %cst = arith.constant dense<0.000000e+00> : vector<16x128xf32>
    %2 = tpu.matmul %0, %1, %cst {dimension_numbers = #tpu.dot_dimension_numbers<[1], [0], [0], [1], [0, 0, 1, 1], [], []>} : vector<16x128xf32>, vector<128x128xf32>, vector<16x128xf32> -> vector<16x128xf32>
    %c0_3 = arith.constant 0 : index
    %c0_4 = arith.constant 0 : index
    %3 = vector.load %arg3[%c0_3, %c0_4] : memref<8x128xf32, #tpu.memory_space<vmem>>, vector<1x128xf32>
    %4 = vector.broadcast %3 : vector<1x128xf32> to vector<16x128xf32>
    %5 = arith.addf %2, %4 : vector<16x128xf32>
    %cst_5 = arith.constant 0.000000e+00 : f32
    %6 = vector.broadcast %cst_5 : f32 to vector<16x128xf32>
    %7 = arith.maximumf %5, %6 : vector<16x128xf32>
    %c1 = arith.constant 1 : index
    %c0_6 = arith.constant 0 : index
    %8 = vector.load %arg3[%c1, %c0_6] : memref<8x128xf32, #tpu.memory_space<vmem>>, vector<1x128xf32>
    %9 = vector.broadcast %8 : vector<1x128xf32> to vector<16x128xf32>
    %10 = arith.mulf %7, %9 : vector<16x128xf32>
    %c2 = arith.constant 2 : index
    %c0_7 = arith.constant 0 : index
    %11 = vector.load %arg3[%c2, %c0_7] : memref<8x128xf32, #tpu.memory_space<vmem>>, vector<1x128xf32>
    %12 = vector.broadcast %11 : vector<1x128xf32> to vector<16x128xf32>
    %13 = arith.addf %10, %12 : vector<16x128xf32>
    %c0_8 = arith.constant 0 : index
    %c0_9 = arith.constant 0 : index
    %14 = vector.load %arg4[%c0_8, %c0_9] : memref<128x128xf32, #tpu.memory_space<vmem>>, vector<128x128xf32>
    %cst_10 = arith.constant dense<0.000000e+00> : vector<16x128xf32>
    %15 = tpu.matmul %13, %14, %cst_10 {dimension_numbers = #tpu.dot_dimension_numbers<[1], [0], [0], [1], [0, 0, 1, 1], [], []>} : vector<16x128xf32>, vector<128x128xf32>, vector<16x128xf32> -> vector<16x128xf32>
    %c0_11 = arith.constant 0 : index
    %c0_12 = arith.constant 0 : index
    %16 = vector.load %arg5[%c0_11, %c0_12] : memref<8x128xf32, #tpu.memory_space<vmem>>, vector<1x128xf32>
    %17 = vector.broadcast %16 : vector<1x128xf32> to vector<16x128xf32>
    %18 = arith.addf %15, %17 : vector<16x128xf32>
    %cst_13 = arith.constant 0.000000e+00 : f32
    %19 = vector.broadcast %cst_13 : f32 to vector<16x128xf32>
    %20 = arith.maximumf %18, %19 : vector<16x128xf32>
    %c1_14 = arith.constant 1 : index
    %c0_15 = arith.constant 0 : index
    %21 = vector.load %arg5[%c1_14, %c0_15] : memref<8x128xf32, #tpu.memory_space<vmem>>, vector<1x128xf32>
    %22 = vector.broadcast %21 : vector<1x128xf32> to vector<16x128xf32>
    %23 = arith.mulf %20, %22 : vector<16x128xf32>
    %c2_16 = arith.constant 2 : index
    %c0_17 = arith.constant 0 : index
    %24 = vector.load %arg5[%c2_16, %c0_17] : memref<8x128xf32, #tpu.memory_space<vmem>>, vector<1x128xf32>
    %25 = vector.broadcast %24 : vector<1x128xf32> to vector<16x128xf32>
    %26 = arith.addf %23, %25 : vector<16x128xf32>
    %c0_18 = arith.constant 0 : index
    %c0_19 = arith.constant 0 : index
    %27 = vector.load %arg6[%c0_18, %c0_19] : memref<128x128xf32, #tpu.memory_space<vmem>>, vector<128x128xf32>
    %cst_20 = arith.constant dense<0.000000e+00> : vector<16x128xf32>
    %28 = tpu.matmul %26, %27, %cst_20 {dimension_numbers = #tpu.dot_dimension_numbers<[1], [0], [0], [1], [0, 0, 1, 1], [], []>} : vector<16x128xf32>, vector<128x128xf32>, vector<16x128xf32> -> vector<16x128xf32>
    %c0_21 = arith.constant 0 : index
    %c0_22 = arith.constant 0 : index
    %29 = vector.load %arg8[%c0_21, %c0_22] : memref<8x128xf32, #tpu.memory_space<vmem>>, vector<1x128xf32>
    %30 = vector.broadcast %29 : vector<1x128xf32> to vector<16x128xf32>
    %31 = arith.addf %28, %30 : vector<16x128xf32>
    %cst_23 = arith.constant 0.000000e+00 : f32
    %32 = vector.broadcast %cst_23 : f32 to vector<16x128xf32>
    %33 = arith.maximumf %31, %32 : vector<16x128xf32>
    %c0_24 = arith.constant 0 : index
    %c0_25 = arith.constant 0 : index
    %34 = vector.load %arg7[%c0_24, %c0_25] : memref<128x128xf32, #tpu.memory_space<vmem>>, vector<128x128xf32>
    %cst_26 = arith.constant dense<0.000000e+00> : vector<16x128xf32>
    %35 = tpu.matmul %33, %34, %cst_26 {dimension_numbers = #tpu.dot_dimension_numbers<[1], [0], [0], [1], [0, 0, 1, 1], [], []>} : vector<16x128xf32>, vector<128x128xf32>, vector<16x128xf32> -> vector<16x128xf32>
    %36 = arith.addf %26, %35 : vector<16x128xf32>
    %c1_27 = arith.constant 1 : index
    %c0_28 = arith.constant 0 : index
    %37 = vector.load %arg8[%c1_27, %c0_28] : memref<8x128xf32, #tpu.memory_space<vmem>>, vector<1x128xf32>
    %38 = vector.broadcast %37 : vector<1x128xf32> to vector<16x128xf32>
    %39 = arith.addf %36, %38 : vector<16x128xf32>
    %c0_29 = arith.constant 0 : index
    %c0_30 = arith.constant 0 : index
    %40 = vector.load %arg9[%c0_29, %c0_30] : memref<128x128xf32, #tpu.memory_space<vmem>>, vector<128x128xf32>
    %cst_31 = arith.constant dense<0.000000e+00> : vector<16x128xf32>
    %41 = tpu.matmul %39, %40, %cst_31 {dimension_numbers = #tpu.dot_dimension_numbers<[1], [0], [0], [1], [0, 0, 1, 1], [], []>} : vector<16x128xf32>, vector<128x128xf32>, vector<16x128xf32> -> vector<16x128xf32>
    %c0_32 = arith.constant 0 : index
    %c0_33 = arith.constant 0 : index
    %42 = vector.load %arg10[%c0_32, %c0_33] : memref<8x128xf32, #tpu.memory_space<vmem>>, vector<1x128xf32>
    %43 = vector.broadcast %42 : vector<1x128xf32> to vector<16x128xf32>
    %44 = arith.addf %41, %43 : vector<16x128xf32>
    %cst_34 = arith.constant 0.000000e+00 : f32
    %45 = vector.broadcast %cst_34 : f32 to vector<16x128xf32>
    %46 = arith.maximumf %44, %45 : vector<16x128xf32>
    %c0_35 = arith.constant 0 : index
    %c0_36 = arith.constant 0 : index
    %47 = vector.load %arg11[%c0_35, %c0_36] : memref<16x128xf32, #tpu.memory_space<vmem>>, vector<16x128xf32>
    tpu.vector_store %arg11[%c0_35, %c0_36], %46 {strides = array<i32>} : memref<16x128xf32, #tpu.memory_space<vmem>>, vector<16x128xf32>,
    return
  }
  func.func @transform_0(%arg0: i32) -> (i32, i32) {
    %c0_i32 = arith.constant 0 : i32
    %c0_i32_0 = arith.constant 0 : i32
    return %arg0, %c0_i32 : i32, i32
  }
  func.func @transform_1(%arg0: i32) -> (i32, i32) {
    %c0_i32 = arith.constant 0 : i32
    %c0_i32_0 = arith.constant 0 : i32
    %c0_i32_1 = arith.constant 0 : i32
    return %c0_i32, %c0_i32_0 : i32, i32
  }
  func.func @transform_2(%arg0: i32) -> (i32, i32) {
    %c0_i32 = arith.constant 0 : i32
    %c0_i32_0 = arith.constant 0 : i32
    %c0_i32_1 = arith.constant 0 : i32
    return %c0_i32, %c0_i32_0 : i32, i32
  }
  func.func @transform_3(%arg0: i32) -> (i32, i32) {
    %c0_i32 = arith.constant 0 : i32
    %c0_i32_0 = arith.constant 0 : i32
    %c0_i32_1 = arith.constant 0 : i32
    return %c0_i32, %c0_i32_0 : i32, i32
  }
  func.func @transform_4(%arg0: i32) -> (i32, i32) {
    %c0_i32 = arith.constant 0 : i32
    %c0_i32_0 = arith.constant 0 : i32
    %c0_i32_1 = arith.constant 0 : i32
    return %c0_i32, %c0_i32_0 : i32, i32
  }
  func.func @transform_5(%arg0: i32) -> (i32, i32) {
    %c0_i32 = arith.constant 0 : i32
    %c0_i32_0 = arith.constant 0 : i32
    %c0_i32_1 = arith.constant 0 : i32
    return %c0_i32, %c0_i32_0 : i32, i32
  }
  func.func @transform_6(%arg0: i32) -> (i32, i32) {
    %c0_i32 = arith.constant 0 : i32
    %c0_i32_0 = arith.constant 0 : i32
    %c0_i32_1 = arith.constant 0 : i32
    return %c0_i32, %c0_i32_0 : i32, i32
  }
  func.func @transform_7(%arg0: i32) -> (i32, i32) {
    %c0_i32 = arith.constant 0 : i32
    %c0_i32_0 = arith.constant 0 : i32
    %c0_i32_1 = arith.constant 0 : i32
    return %c0_i32, %c0_i32_0 : i32, i32
  }
  func.func @transform_8(%arg0: i32) -> (i32, i32) {
    %c0_i32 = arith.constant 0 : i32
    %c0_i32_0 = arith.constant 0 : i32
    %c0_i32_1 = arith.constant 0 : i32
    return %c0_i32, %c0_i32_0 : i32, i32
  }
  func.func @transform_9(%arg0: i32) -> (i32, i32) {
    %c0_i32 = arith.constant 0 : i32
    %c0_i32_0 = arith.constant 0 : i32
    %c0_i32_1 = arith.constant 0 : i32
    return %c0_i32, %c0_i32_0 : i32, i32
  }
  func.func @transform_10(%arg0: i32) -> (i32, i32) {
    %c0_i32 = arith.constant 0 : i32
    %c0_i32_0 = arith.constant 0 : i32
    return %arg0, %c0_i32 : i32, i32
  }
}

</mosaic_0001>

<llo_original>
// kernel: _lambda_.1
$region0: #{_lambda_.1}
  #allocation0 [shape = 'u32[]', space=smem, size = 0x4, offset = 0x4, fixed_abs, tag = 'smem constant byte address 0x4 - core index']
  #allocation1 [shape = 'u32[72,128]{1,0:T(1,128)}', space=vmem, size = 0x9000, scoped, tag = 'internal scratch']
  %s0 = inlined_call_operand.vmem [shape: f32[16,128], index: 0, kind: input, shape index: {}]
  %s1 = inlined_call_operand.hbm [shape: f32[128,128], index: 1, kind: input, shape index: {}]
  %s2 = inlined_call_operand.vmem [shape: f32[8,128], index: 2, kind: input, shape index: {}]
  %s3 = inlined_call_operand.hbm [shape: f32[128,128], index: 3, kind: input, shape index: {}]
  %s4 = inlined_call_operand.vmem [shape: f32[8,128], index: 4, kind: input, shape index: {}]
  %s5 = inlined_call_operand.hbm [shape: f32[128,128], index: 5, kind: input, shape index: {}]
  %s6 = inlined_call_operand.hbm [shape: f32[128,128], index: 6, kind: input, shape index: {}]
  %s7 = inlined_call_operand.vmem [shape: f32[8,128], index: 7, kind: input, shape index: {}]
  %s8 = inlined_call_operand.hbm [shape: f32[128,128], index: 8, kind: input, shape index: {}]
  %s9 = inlined_call_operand.vmem [shape: f32[8,128], index: 9, kind: input, shape index: {}]
  %s10 = inlined_call_operand.hbm [shape: f32[16,128], index: 10, kind: output, shape index: {}]
  %s11 = sld [smem:[#allocation0]]
  $region70: #{_lambda_.1} parent=0
    _
  %s13 = ssub.s32 1, %s11
  %s14 = scalar_select 0, %s13, %s11
  $region1: #{_lambda_.1} parent=0
    #allocation2 [shape = 'u8[65536]{0}', space=vmem, size = 0x10000, scoped, tag = 'input window, operand 1, single buffered']
    #allocation3 [shape = 's32[1]{0}', space=sflag, size = 0x4, scoped, tag = 'scoped memory for _lambda_.1']
    #allocation4 [shape = 's32[1]{0}', space=sflag, size = 0x4, scoped, tag = 'scoped memory for _lambda_.1']
    #allocation5 [shape = 'u8[65536]{0}', space=vmem, size = 0x10000, scoped, tag = 'input window, operand 3, single buffered']
    #allocation6 [shape = 's32[1]{0}', space=sflag, size = 0x4, scoped, tag = 'scoped memory for _lambda_.1']
    #allocation7 [shape = 'u8[65536]{0}', space=vmem, size = 0x10000, scoped, tag = 'input window, operand 5, single buffered']
    #allocation8 [shape = 'u8[65536]{0}', space=vmem, size = 0x10000, scoped, tag = 'input window, operand 6, single buffered']
    #allocation9 [shape = 's32[1]{0}', space=sflag, size = 0x4, scoped, tag = 'scoped memory for _lambda_.1']
    #allocation10 [shape = 'u8[65536]{0}', space=vmem, size = 0x10000, scoped, tag = 'input window, operand 8, single buffered']
    #allocation11 [shape = 'u8[8192]{0}', space=vmem, size = 0x2000, scoped, tag = 'output window, operand 0, single buffered']
    %15 = vsyncpa [#allocation3], 0
    %16 = vsyncpa [#allocation6], 0
    %17 = vsyncpa [#allocation9], 0
    %18 = vsyncpa [#allocation4], 0
    // Predicated region
    $region2: #{_lambda_.1} parent=1 // pred_check
      _
    $region3: #{_lambda_.1} parent=1 // pred_check_branch
      %20 = sbr.rel (0) target = $region5
    $region4: #{_lambda_.1} parent=1 // pred_region
      _
    $region5: #{_lambda_.1} parent=1 // pred_fallthru
      _
    // Predicated region
    $region6: #{_lambda_.1} parent=1 // pred_check
      _
    $region7: #{_lambda_.1} parent=1 // pred_check_branch
      %22 = sbr.rel (0) target = $region9
    $region8: #{_lambda_.1} parent=1 // pred_region
      %24 = vsyncadd [#allocation3], 0
      %s25 = sshll.u32 %s1, 4
      %s26 = int_to_ptr.hbm [resolvable:$true] %s25
      %s27 = sshll.u32 [#allocation2], 4
      %s28 = int_to_ptr.vmem [resolvable:$true] %s27
      %33 = dma.hbm_to_vmem [thread:$0]  %s26, 2048, %s28, [#allocation3], 128, 128, 8
    $region9: #{_lambda_.1} parent=1 // pred_fallthru
      _
    // Predicated region
    $region10: #{_lambda_.1} parent=1 // pred_check
      _
    $region11: #{_lambda_.1} parent=1 // pred_check_branch
      %35 = sbr.rel (0) target = $region13
    $region12: #{_lambda_.1} parent=1 // pred_region
      _
    $region13: #{_lambda_.1} parent=1 // pred_fallthru
      _
    // Predicated region
    $region14: #{_lambda_.1} parent=1 // pred_check
      _
    $region15: #{_lambda_.1} parent=1 // pred_check_branch
      %37 = sbr.rel (0) target = $region17
    $region16: #{_lambda_.1} parent=1 // pred_region
      %39 = vsyncadd [#allocation6], 0
      %s40 = sshll.u32 %s3, 4
      %s41 = int_to_ptr.hbm [resolvable:$true] %s40
      %s42 = sshll.u32 [#allocation5], 4
      %s43 = int_to_ptr.vmem [resolvable:$true] %s42
      %48 = dma.hbm_to_vmem [thread:$0]  %s41, 2048, %s43, [#allocation6], 128, 128, 8
    $region17: #{_lambda_.1} parent=1 // pred_fallthru
      _
    // Predicated region
    $region18: #{_lambda_.1} parent=1 // pred_check
      _
    $region19: #{_lambda_.1} parent=1 // pred_check_branch
      %50 = sbr.rel (0) target = $region21
    $region20: #{_lambda_.1} parent=1 // pred_region
      _
    $region21: #{_lambda_.1} parent=1 // pred_fallthru
      _
    // Predicated region
    $region22: #{_lambda_.1} parent=1 // pred_check
      _
    $region23: #{_lambda_.1} parent=1 // pred_check_branch
      %52 = sbr.rel (0) target = $region25
    $region24: #{_lambda_.1} parent=1 // pred_region
      %54 = vsyncadd [#allocation6], 0
      %s55 = sshll.u32 %s5, 4
      %s56 = int_to_ptr.hbm [resolvable:$true] %s55
      %s57 = sshll.u32 [#allocation7], 4
      %s58 = int_to_ptr.vmem [resolvable:$true] %s57
      %63 = dma.hbm_to_vmem [thread:$0]  %s56, 2048, %s58, [#allocation6], 128, 128, 8
    $region25: #{_lambda_.1} parent=1 // pred_fallthru
      _
    // Predicated region
    $region26: #{_lambda_.1} parent=1 // pred_check
      _
    $region27: #{_lambda_.1} parent=1 // pred_check_branch
      %65 = sbr.rel (0) target = $region29
    $region28: #{_lambda_.1} parent=1 // pred_region
      %67 = vsyncadd [#allocation9], 0
      %s68 = sshll.u32 %s6, 4
      %s69 = int_to_ptr.hbm [resolvable:$true] %s68
      %s70 = sshll.u32 [#allocation8], 4
      %s71 = int_to_ptr.vmem [resolvable:$true] %s70
      %76 = dma.hbm_to_vmem [thread:$0]  %s69, 2048, %s71, [#allocation9], 128, 128, 8
    $region29: #{_lambda_.1} parent=1 // pred_fallthru
      _
    // Predicated region
    $region30: #{_lambda_.1} parent=1 // pred_check
      _
    $region31: #{_lambda_.1} parent=1 // pred_check_branch
      %78 = sbr.rel (0) target = $region33
    $region32: #{_lambda_.1} parent=1 // pred_region
      _
    $region33: #{_lambda_.1} parent=1 // pred_fallthru
      _
    // Predicated region
    $region34: #{_lambda_.1} parent=1 // pred_check
      _
    $region35: #{_lambda_.1} parent=1 // pred_check_branch
      %80 = sbr.rel (0) target = $region37
    $region36: #{_lambda_.1} parent=1 // pred_region
      %82 = vsyncadd [#allocation9], 0
      %s83 = sshll.u32 %s8, 4
      %s84 = int_to_ptr.hbm [resolvable:$true] %s83
      %s85 = sshll.u32 [#allocation10], 4
      %s86 = int_to_ptr.vmem [resolvable:$true] %s85
      %91 = dma.hbm_to_vmem [thread:$0]  %s84, 2048, %s86, [#allocation9], 128, 128, 8
    $region37: #{_lambda_.1} parent=1 // pred_fallthru
      _
    // Predicated region
    $region38: #{_lambda_.1} parent=1 // pred_check
      _
    $region39: #{_lambda_.1} parent=1 // pred_check_branch
      %93 = sbr.rel (0) target = $region41
    $region40: #{_lambda_.1} parent=1 // pred_region
      _
    $region41: #{_lambda_.1} parent=1 // pred_fallthru
      _
    // Predicated region
    $region42: #{_lambda_.1} parent=1 // pred_check
      _
    $region43: #{_lambda_.1} parent=1 // pred_check_branch
      %95 = sbr.rel (0) target = $region45
    $region44: #{_lambda_.1} parent=1 // pred_region
      %97 = dma.done [#allocation3], 2048
    $region45: #{_lambda_.1} parent=1 // pred_fallthru
      _
    // Predicated region
    $region46: #{_lambda_.1} parent=1 // pred_check
      _
    $region47: #{_lambda_.1} parent=1 // pred_check_branch
      %99 = sbr.rel (0) target = $region49
    $region48: #{_lambda_.1} parent=1 // pred_region
      %101 = dma.done [#allocation6], 2048
    $region49: #{_lambda_.1} parent=1 // pred_fallthru
      _
    // Predicated region
    $region50: #{_lambda_.1} parent=1 // pred_check
      _
    $region51: #{_lambda_.1} parent=1 // pred_check_branch
      %103 = sbr.rel (0) target = $region53
    $region52: #{_lambda_.1} parent=1 // pred_region
      %105 = dma.done [#allocation6], 2048
    $region53: #{_lambda_.1} parent=1 // pred_fallthru
      _
    // Predicated region
    $region54: #{_lambda_.1} parent=1 // pred_check
      _
    $region55: #{_lambda_.1} parent=1 // pred_check_branch
      %107 = sbr.rel (0) target = $region57
    $region56: #{_lambda_.1} parent=1 // pred_region
      %109 = dma.done [#allocation9], 2048
    $region57: #{_lambda_.1} parent=1 // pred_fallthru
      _
    // Predicated region
    $region58: #{_lambda_.1} parent=1 // pred_check
      _
    $region59: #{_lambda_.1} parent=1 // pred_check_branch
      %111 = sbr.rel (0) target = $region61
    $region60: #{_lambda_.1} parent=1 // pred_region
      %113 = dma.done [#allocation9], 2048
    $region61: #{_lambda_.1} parent=1 // pred_fallthru
      _
    %v114 = vld [vmem:[%s0] sm:$0xff]
    %v115 = vld [vmem:[%s0 + $0x8] sm:$0xff]
    %v116 = vld [vmem:[#allocation2] sm:$0xff]
    %v117 = vld [vmem:[#allocation2 + $0x8] sm:$0xff]
    %v118 = vld [vmem:[#allocation2 + $0x10] sm:$0xff]
    %v119 = vld [vmem:[#allocation2 + $0x18] sm:$0xff]
    %v120 = vld [vmem:[#allocation2 + $0x20] sm:$0xff]
    %v121 = vld [vmem:[#allocation2 + $0x28] sm:$0xff]
    %v122 = vld [vmem:[#allocation2 + $0x30] sm:$0xff]
    %v123 = vld [vmem:[#allocation2 + $0x38] sm:$0xff]
    %v124 = vld [vmem:[#allocation2 + $0x40] sm:$0xff]
    %v125 = vld [vmem:[#allocation2 + $0x48] sm:$0xff]
    %v126 = vld [vmem:[#allocation2 + $0x50] sm:$0xff]
    %v127 = vld [vmem:[#allocation2 + $0x58] sm:$0xff]
    %v128 = vld [vmem:[#allocation2 + $0x60] sm:$0xff]
    %v129 = vld [vmem:[#allocation2 + $0x68] sm:$0xff]
    %v130 = vld [vmem:[#allocation2 + $0x70] sm:$0xff]
    %v131 = vld [vmem:[#allocation2 + $0x78] sm:$0xff]
    %v132 = vld [vmem:[%s2] sm:$0x1]
    %v133 = vperm.slane %v132, 0
    %134 = vmatpush.msra.mxu0 %v131
    %135 = vmatpush.msra.mxu0 %v130
    %136 = vmatpush.msra.mxu0 %v129
    %137 = vmatpush.msra.mxu0 %v128
    %138 = vmatpush.msra.mxu0 %v127
    %139 = vmatpush.msra.mxu0 %v126
    %140 = vmatpush.msra.mxu0 %v125
    %141 = vmatpush.msra.mxu0 %v124
    %142 = vmatpush.msra.mxu0 %v123
    %143 = vmatpush.msra.mxu0 %v122
    %144 = vmatpush.msra.mxu0 %v121
    %145 = vmatpush.msra.mxu0 %v120
    %146 = vmatpush.msra.mxu0 %v119
    %147 = vmatpush.msra.mxu0 %v118
    %148 = vmatpush.msra.mxu0 %v117
    %149 = vmatpush.msra.mxu0 %v116
    %150 = vmatmul.f32.gmra.mxu0 %v114
    %v151 = vpop.f32.mrf.mxu0
    %v152 = vadd.f32 %v133, %v151
    %153 = vmatmul.f32.gmra.mxu0 %v115
    %v154 = vpop.f32.mrf.mxu0
    %v155 = vadd.f32 %v133, %v154
    %156 = vdwg.mxu0
    %v157 = vmax.f32 %v152, 0.0
    %v158 = vmax.f32 %v155, 0.0
    %v159 = vld [vmem:[%s2 + $0x1] sm:$0x1]
    %v160 = vperm.slane %v159, 0
    %v161 = vmul.f32 %v157, %v160
    %v162 = vmul.f32 %v158, %v160
    %v163 = vld [vmem:[%s2 + $0x2] sm:$0x1]
    %v164 = vperm.slane %v163, 0
    %v165 = vadd.f32 %v161, %v164
    %v166 = vadd.f32 %v162, %v164
    %v167 = vld [vmem:[#allocation5] sm:$0xff]
    %v168 = vld [vmem:[#allocation5 + $0x8] sm:$0xff]
    %v169 = vld [vmem:[#allocation5 + $0x10] sm:$0xff]
    %v170 = vld [vmem:[#allocation5 + $0x18] sm:$0xff]
    %v171 = vld [vmem:[#allocation5 + $0x20] sm:$0xff]
    %v172 = vld [vmem:[#allocation5 + $0x28] sm:$0xff]
    %v173 = vld [vmem:[#allocation5 + $0x30] sm:$0xff]
    %v174 = vld [vmem:[#allocation5 + $0x38] sm:$0xff]
    %v175 = vld [vmem:[#allocation5 + $0x40] sm:$0xff]
    %v176 = vld [vmem:[#allocation5 + $0x48] sm:$0xff]
    %v177 = vld [vmem:[#allocation5 + $0x50] sm:$0xff]
    %v178 = vld [vmem:[#allocation5 + $0x58] sm:$0xff]
    %v179 = vld [vmem:[#allocation5 + $0x60] sm:$0xff]
    %v180 = vld [vmem:[#allocation5 + $0x68] sm:$0xff]
    %v181 = vld [vmem:[#allocation5 + $0x70] sm:$0xff]
    %v182 = vld [vmem:[#allocation5 + $0x78] sm:$0xff]
    %v183 = vld [vmem:[%s4] sm:$0x1]
    %v184 = vperm.slane %v183, 0
    %185 = vmatpush.msra.mxu0 %v182
    %186 = vmatpush.msra.mxu0 %v181
    %187 = vmatpush.msra.mxu0 %v180
    %188 = vmatpush.msra.mxu0 %v179
    %189 = vmatpush.msra.mxu0 %v178
    %190 = vmatpush.msra.mxu0 %v177
    %191 = vmatpush.msra.mxu0 %v176
    %192 = vmatpush.msra.mxu0 %v175
    %193 = vmatpush.msra.mxu0 %v174
    %194 = vmatpush.msra.mxu0 %v173
    %195 = vmatpush.msra.mxu0 %v172
    %196 = vmatpush.msra.mxu0 %v171
    %197 = vmatpush.msra.mxu0 %v170
    %198 = vmatpush.msra.mxu0 %v169
    %199 = vmatpush.msra.mxu0 %v168
    %200 = vmatpush.msra.mxu0 %v167
    %201 = vmatmul.f32.gmra.mxu0 %v165
    %v202 = vpop.f32.mrf.mxu0
    %v203 = vadd.f32 %v184, %v202
    %204 = vmatmul.f32.gmra.mxu0 %v166
    %v205 = vpop.f32.mrf.mxu0
    %v206 = vadd.f32 %v184, %v205
    %207 = vdwg.mxu0
    %v208 = vmax.f32 %v203, 0.0
    %v209 = vmax.f32 %v206, 0.0
    %v210 = vld [vmem:[%s4 + $0x1] sm:$0x1]
    %v211 = vperm.slane %v210, 0
    %v212 = vmul.f32 %v208, %v211
    %v213 = vmul.f32 %v209, %v211
    %v214 = vld [vmem:[%s4 + $0x2] sm:$0x1]
    %v215 = vperm.slane %v214, 0
    %v216 = vadd.f32 %v212, %v215
    %v217 = vadd.f32 %v213, %v215
    %v218 = vld [vmem:[#allocation7] sm:$0xff]
    %v219 = vld [vmem:[#allocation7 + $0x8] sm:$0xff]
    %v220 = vld [vmem:[#allocation7 + $0x10] sm:$0xff]
    %v221 = vld [vmem:[#allocation7 + $0x18] sm:$0xff]
    %v222 = vld [vmem:[#allocation7 + $0x20] sm:$0xff]
    %v223 = vld [vmem:[#allocation7 + $0x28] sm:$0xff]
    %v224 = vld [vmem:[#allocation7 + $0x30] sm:$0xff]
    %v225 = vld [vmem:[#allocation7 + $0x38] sm:$0xff]
    %v226 = vld [vmem:[#allocation7 + $0x40] sm:$0xff]
    %v227 = vld [vmem:[#allocation7 + $0x48] sm:$0xff]
    %v228 = vld [vmem:[#allocation7 + $0x50] sm:$0xff]
    %v229 = vld [vmem:[#allocation7 + $0x58] sm:$0xff]
    %v230 = vld [vmem:[#allocation7 + $0x60] sm:$0xff]
    %v231 = vld [vmem:[#allocation7 + $0x68] sm:$0xff]
    %v232 = vld [vmem:[#allocation7 + $0x70] sm:$0xff]
    %v233 = vld [vmem:[#allocation7 + $0x78] sm:$0xff]
    %v234 = vld [vmem:[%s7] sm:$0x1]
    %v235 = vperm.slane %v234, 0
    %236 = vmatpush.msra.mxu0 %v233
    %237 = vmatpush.msra.mxu0 %v232
    %238 = vmatpush.msra.mxu0 %v231
    %239 = vmatpush.msra.mxu0 %v230
    %240 = vmatpush.msra.mxu0 %v229
    %241 = vmatpush.msra.mxu0 %v228
    %242 = vmatpush.msra.mxu0 %v227
    %243 = vmatpush.msra.mxu0 %v226
    %244 = vmatpush.msra.mxu0 %v225
    %245 = vmatpush.msra.mxu0 %v224
    %246 = vmatpush.msra.mxu0 %v223
    %247 = vmatpush.msra.mxu0 %v222
    %248 = vmatpush.msra.mxu0 %v221
    %249 = vmatpush.msra.mxu0 %v220
    %250 = vmatpush.msra.mxu0 %v219
    %251 = vmatpush.msra.mxu0 %v218
    %252 = vmatmul.f32.gmra.mxu0 %v216
    %v253 = vpop.f32.mrf.mxu0
    %v254 = vadd.f32 %v235, %v253
    %255 = vmatmul.f32.gmra.mxu0 %v217
    %v256 = vpop.f32.mrf.mxu0
    %v257 = vadd.f32 %v235, %v256
    %258 = vdwg.mxu0
    %v259 = vmax.f32 %v254, 0.0
    %v260 = vmax.f32 %v257, 0.0
    %v261 = vld [vmem:[#allocation8] sm:$0xff]
    %v262 = vld [vmem:[#allocation8 + $0x8] sm:$0xff]
    %v263 = vld [vmem:[#allocation8 + $0x10] sm:$0xff]
    %v264 = vld [vmem:[#allocation8 + $0x18] sm:$0xff]
    %v265 = vld [vmem:[#allocation8 + $0x20] sm:$0xff]
    %v266 = vld [vmem:[#allocation8 + $0x28] sm:$0xff]
    %v267 = vld [vmem:[#allocation8 + $0x30] sm:$0xff]
    %v268 = vld [vmem:[#allocation8 + $0x38] sm:$0xff]
    %v269 = vld [vmem:[#allocation8 + $0x40] sm:$0xff]
    %v270 = vld [vmem:[#allocation8 + $0x48] sm:$0xff]
    %v271 = vld [vmem:[#allocation8 + $0x50] sm:$0xff]
    %v272 = vld [vmem:[#allocation8 + $0x58] sm:$0xff]
    %v273 = vld [vmem:[#allocation8 + $0x60] sm:$0xff]
    %v274 = vld [vmem:[#allocation8 + $0x68] sm:$0xff]
    %v275 = vld [vmem:[#allocation8 + $0x70] sm:$0xff]
    %v276 = vld [vmem:[#allocation8 + $0x78] sm:$0xff]
    %277 = vmatpush.msra.mxu0 %v276
    %278 = vmatpush.msra.mxu0 %v275
    %279 = vmatpush.msra.mxu0 %v274
    %280 = vmatpush.msra.mxu0 %v273
    %281 = vmatpush.msra.mxu0 %v272
    %282 = vmatpush.msra.mxu0 %v271
    %283 = vmatpush.msra.mxu0 %v270
    %284 = vmatpush.msra.mxu0 %v269
    %285 = vmatpush.msra.mxu0 %v268
    %286 = vmatpush.msra.mxu0 %v267
    %287 = vmatpush.msra.mxu0 %v266
    %288 = vmatpush.msra.mxu0 %v265
    %289 = vmatpush.msra.mxu0 %v264
    %290 = vmatpush.msra.mxu0 %v263
    %291 = vmatpush.msra.mxu0 %v262
    %292 = vmatpush.msra.mxu0 %v261
    %293 = vmatmul.f32.gmra.mxu0 %v259
    %v294 = vpop.f32.mrf.mxu0
    %v295 = vadd.f32 0.0, %v294
    %296 = vmatmul.f32.gmra.mxu0 %v260
    %v297 = vpop.f32.mrf.mxu0
    %v298 = vadd.f32 0.0, %v297
    %299 = vdwg.mxu0
    %v300 = vadd.f32 %v216, %v295
    %v301 = vadd.f32 %v217, %v298
    %v302 = vld [vmem:[%s7 + $0x1] sm:$0x1]
    %v303 = vperm.slane %v302, 0
    %v304 = vadd.f32 %v300, %v303
    %v305 = vadd.f32 %v301, %v303
    %v306 = vld [vmem:[#allocation10] sm:$0xff]
    %v307 = vld [vmem:[#allocation10 + $0x8] sm:$0xff]
    %v308 = vld [vmem:[#allocation10 + $0x10] sm:$0xff]
    %v309 = vld [vmem:[#allocation10 + $0x18] sm:$0xff]
    %v310 = vld [vmem:[#allocation10 + $0x20] sm:$0xff]
    %v311 = vld [vmem:[#allocation10 + $0x28] sm:$0xff]
    %v312 = vld [vmem:[#allocation10 + $0x30] sm:$0xff]
    %v313 = vld [vmem:[#allocation10 + $0x38] sm:$0xff]
    %v314 = vld [vmem:[#allocation10 + $0x40] sm:$0xff]
    %v315 = vld [vmem:[#allocation10 + $0x48] sm:$0xff]
    %v316 = vld [vmem:[#allocation10 + $0x50] sm:$0xff]
    %v317 = vld [vmem:[#allocation10 + $0x58] sm:$0xff]
    %v318 = vld [vmem:[#allocation10 + $0x60] sm:$0xff]
    %v319 = vld [vmem:[#allocation10 + $0x68] sm:$0xff]
    %v320 = vld [vmem:[#allocation10 + $0x70] sm:$0xff]
    %v321 = vld [vmem:[#allocation10 + $0x78] sm:$0xff]
    %v322 = vld [vmem:[%s9] sm:$0x1]
    %v323 = vperm.slane %v322, 0
    %324 = vmatpush.msra.mxu0 %v321
    %325 = vmatpush.msra.mxu0 %v320
    %326 = vmatpush.msra.mxu0 %v319
    %327 = vmatpush.msra.mxu0 %v318
    %328 = vmatpush.msra.mxu0 %v317
    %329 = vmatpush.msra.mxu0 %v316
    %330 = vmatpush.msra.mxu0 %v315
    %331 = vmatpush.msra.mxu0 %v314
    %332 = vmatpush.msra.mxu0 %v313
    %333 = vmatpush.msra.mxu0 %v312
    %334 = vmatpush.msra.mxu0 %v311
    %335 = vmatpush.msra.mxu0 %v310
    %336 = vmatpush.msra.mxu0 %v309
    %337 = vmatpush.msra.mxu0 %v308
    %338 = vmatpush.msra.mxu0 %v307
    %339 = vmatpush.msra.mxu0 %v306
    %340 = vmatmul.f32.gmra.mxu0 %v304
    %v341 = vpop.f32.mrf.mxu0
    %v342 = vadd.f32 %v323, %v341
    %343 = vmatmul.f32.gmra.mxu0 %v305
    %v344 = vpop.f32.mrf.mxu0
    %v345 = vadd.f32 %v323, %v344
    %346 = vdwg.mxu0
    %v347 = vmax.f32 %v342, 0.0
    %v348 = vmax.f32 %v345, 0.0
    %349 = vst [vmem:[#allocation11] sm:$0xff] %v347
    %350 = vst [vmem:[#allocation11 + $0x8] sm:$0xff] %v348
    // Predicated region
    $region62: #{_lambda_.1} parent=1 // pred_check
      _
    $region63: #{_lambda_.1} parent=1 // pred_check_branch
      %352 = sbr.rel (0) target = $region65
    $region64: #{_lambda_.1} parent=1 // pred_region
      %354 = vsyncadd [#allocation4], 0
      %s355 = sshll.u32 [#allocation11], 4
      %s356 = int_to_ptr.vmem [resolvable:$true] %s355
      %s357 = sshll.u32 %s10, 4
      %s358 = int_to_ptr.hbm [resolvable:$true] %s357
      %363 = dma.vmem_to_hbm [thread:$0]  %s356, 256, %s358, [#allocation4], 128, 128, 8
    $region65: #{_lambda_.1} parent=1 // pred_fallthru
      _
    // Predicated region
    $region66: #{_lambda_.1} parent=1 // pred_check
      _
    $region67: #{_lambda_.1} parent=1 // pred_check_branch
      %365 = sbr.rel (0) target = $region69
    $region68: #{_lambda_.1} parent=1 // pred_region
      %367 = dma.done [#allocation4], 256
    $region69: #{_lambda_.1} parent=1 // pred_fallthru
      _
    %368 = vsyncpa [#allocation3], 1
    %369 = vsyncpa [#allocation6], 1
    %370 = vsyncpa [#allocation9], 1
    %371 = vsyncpa [#allocation4], 1

</llo_original>
